<compile_context>
chip_gen: v7x
topology: tpu7x:2x2x1
jax: 0.10.0
libtpu: 0.0.40
codegen_flags: <defaults>
</compile_context>

<pallas_src>
import functools

import jax
import jax.numpy as jnp
from jax.experimental import pallas as pl
from jax.experimental.pallas import tpu as pltpu

_LANES = 128
_SUBLANES = 8
_MAX_TILE_ROWS = 8192      # 8192 x 128 x 4 B = 4 MiB per f32 tile


def _tensorcores_per_chip():
    """2 on v7x-family chips (2 TensorCores/chip), else 1 (v5e/v6e/...)."""
    try:
        kind = jax.devices()[0].device_kind.lower()
    except Exception:
        return 1
    return 2 if ("v7" in kind or "7x" in kind) else 1


def _focal_loss_kernel(x_ref, y_ref, out_ref, acc_ref, *,
                       alpha, gamma, tile_rows, full_rows, rem,
                       num_blocks, blocks_per_split, splits, tail_needs_mask):
    c = pl.program_id(0)              # split ("core") index
    i = pl.program_id(1)              # row-block index within the split
    g = c * blocks_per_split + i      # global row-block index

    has_phantom = (splits * blocks_per_split != num_blocks)

    @pl.when(i == 0)
    def _():
        acc_ref[...] = jnp.zeros_like(acc_ref)

    x = x_ref[...].astype(jnp.float32)
    y = y_ref[...].astype(jnp.float32)

    # ---- focal-loss math: 3 EUP ops / element (exp, log1p, approx rcp) ----
    e = jnp.exp(-jnp.abs(x))                       # exp(-|x|) in (0, 1]
    log1pe = jnp.log1p(e)
    denom = 1.0 + e
    r = pl.reciprocal(denom, approx=True)
    r = r * (2.0 - denom * r)                      # Newton step -> ~f32-exact 1/(1+e)
    probs = jnp.where(x >= 0.0, r, e * r)          # sigmoid(x)
    log_probs = jnp.minimum(x, 0.0) - log1pe       # log(sigmoid(x))
    log_1_probs = log_probs - x                    # == min(-x,0) - log1pe

    diff = y - probs
    gf = float(gamma)
    if gf == 2.0:                                  # module default: one VPU multiply
        coeff_mag = diff * diff
    elif gf == float(int(gf)) and 1.0 <= gf <= 8.0:  # small integer powers
        ad = jnp.abs(diff)
        p = ad
        for _ in range(int(gf) - 1):
            p = p * ad
        coeff_mag = p
    else:                                          # general gamma
        coeff_mag = jnp.power(jnp.abs(diff), gf)

    a_term = alpha * log_probs
    b_term = (1.0 - alpha) * log_1_probs
    # Positive-magnitude loss; the final minus sign (torch's coeff.neg()) is
    # folded into a single scalar negate in the wrapper.
    loss = (b_term + y * (a_term - b_term)) * coeff_mag

    def _reduce(v):
        # (tile_rows, 128) -> (tile_rows/8, 8, 128) keeps every (8,128) tile
        # intact, so the sum over axis 0 is pure vreg-wise VALU adds (no XLU).
        return jnp.sum(v.reshape(tile_rows // _SUBLANES, _SUBLANES, _LANES),
                       axis=0)

    if tail_needs_mask:
        @pl.when(g < num_blocks - 1)
        def _():
            acc_ref[...] += _reduce(loss)

        @pl.when(g == num_blocks - 1)
        def _():
            # Last real block: mask padded lanes / padded rows / OOB garbage
            # rows.  Must stay a select (jnp.where), not a multiplicative
            # zeroing: the dropped lanes may hold Inf/NaN from garbage input.
            row_ids = jax.lax.broadcasted_iota(jnp.int32, loss.shape, 0)
            col_ids = jax.lax.broadcasted_iota(jnp.int32, loss.shape, 1)
            grow = g * tile_rows + row_ids         # global row index (int32-safe)
            if rem:
                mask = (grow < full_rows) | ((grow == full_rows) & (col_ids < rem))
            else:
                mask = grow < full_rows
            acc_ref[...] += _reduce(jnp.where(mask, loss, 0.0))
        # g >= num_blocks (phantom duplicate blocks on the second split) skip
        # both branches entirely.
    elif has_phantom:
        @pl.when(g < num_blocks)
        def _():
            acc_ref[...] += _reduce(loss)
    else:
        acc_ref[...] += _reduce(loss)

    # ---- per-split writeback of the (8, 128) partial-sum slab ----
    @pl.when(i == blocks_per_split - 1)
    def _():
        out_ref[0] = acc_ref[...]


def focal_loss_v1(logits, label, alpha=0.25, gamma=2.0, reduction="mean",
                  *, binary_labels=True, num_splits=None,
                  max_tile_rows=_MAX_TILE_ROWS):
    """Pallas TPU implementation of FocalLossV1.forward ('mean'/'sum')."""
    assert logits.shape == label.shape
    total = int(logits.size)
    assert total > 0

    # Row-major flatten; free (no copy) for contiguous NCHW inputs.
    flat_x = jnp.reshape(logits, (-1,))
    flat_y = jnp.reshape(label, (-1,))

    # Halve label HBM traffic inside the kernel.  Exact for {0,1} labels;
    # disable via binary_labels=False if soft labels are used.
    if binary_labels and flat_y.dtype in (jnp.float32, jnp.float64):
        flat_y = flat_y.astype(jnp.bfloat16)

    full_rows, rem = divmod(total, _LANES)
    rows = full_rows + (1 if rem else 0)
    rows = max(rows, _SUBLANES)                   # at least one (8,128) tile
    pad_elems = rows * _LANES - total
    if pad_elems:
        # Only when the element count is not lane-aligned (or tiny); padded
        # elements are masked out inside the kernel.
        flat_x = jnp.pad(flat_x, (0, pad_elems))
        flat_y = jnp.pad(flat_y, (0, pad_elems))
    x2 = jnp.reshape(flat_x, (rows, _LANES))
    y2 = jnp.reshape(flat_y, (rows, _LANES))

    # Tiling: big row tiles (multiple of 8 so the in-kernel (-1,8,128)
    # reduction reshape is layout-free); the partial last block is masked.
    tile_rows = min(int(max_tile_rows), (rows // _SUBLANES) * _SUBLANES)
    tile_rows = max(tile_rows, _SUBLANES)
    num_blocks = pl.cdiv(rows, tile_rows)
    tail_needs_mask = (num_blocks * tile_rows != rows) or (rows * _LANES != total)

    # Core split: 1 on single-TC chips, 2 on v7x-family (sharded via
    # CORE_PARALLEL).  An explicit num_splits override uses plain PARALLEL.
    if num_splits is None:
        tc = _tensorcores_per_chip()
        splits = max(1, min(tc, num_blocks))
        core_sem = getattr(pltpu, "CORE_PARALLEL", pltpu.PARALLEL)
    else:
        splits = max(1, min(int(num_splits), num_blocks))
        core_sem = pltpu.PARALLEL
    blocks_per_split = pl.cdiv(num_blocks, splits)
    dim_sems = ((core_sem if splits > 1 else pltpu.ARBITRARY), pltpu.ARBITRARY)

    def in_index_map(c, i):
        # Clamp phantom trailing blocks onto the last real block (their
        # contribution is skipped inside the kernel).
        return (jnp.minimum(c * blocks_per_split + i, num_blocks - 1), 0)

    kernel = functools.partial(
        _focal_loss_kernel,
        alpha=float(alpha),
        gamma=gamma,
        tile_rows=tile_rows,
        full_rows=full_rows,
        rem=rem,
        num_blocks=num_blocks,
        blocks_per_split=blocks_per_split,
        splits=splits,
        tail_needs_mask=tail_needs_mask,
    )

    bytes_accessed = (x2.size * x2.dtype.itemsize
                      + y2.size * y2.dtype.itemsize
                      + splits * _SUBLANES * _LANES * 4)
    cost = pl.CostEstimate(flops=25 * total, transcendentals=3 * total,
                           bytes_accessed=int(bytes_accessed))

    partials = pl.pallas_call(
        kernel,
        out_shape=jax.ShapeDtypeStruct((splits, _SUBLANES, _LANES), jnp.float32),
        grid_spec=pltpu.PrefetchScalarGridSpec(
            num_scalar_prefetch=0,
            grid=(splits, blocks_per_split),
            in_specs=[
                pl.BlockSpec((tile_rows, _LANES), in_index_map),
                pl.BlockSpec((tile_rows, _LANES), in_index_map),
            ],
            out_specs=pl.BlockSpec((1, _SUBLANES, _LANES), lambda c, i: (c, 0, 0)),
            scratch_shapes=[pltpu.VMEM((_SUBLANES, _LANES), jnp.float32)],
        ),
        compiler_params=pltpu.CompilerParams(
            dimension_semantics=dim_sems,
            vmem_limit_bytes=32 * 1024 * 1024),
        cost_estimate=cost,
    )(x2, y2)

    # Single scalar negate folds torch's coeff.neg() for the whole tensor.
    loss_sum = -jnp.sum(partials)
    if reduction == "mean":
        return loss_sum / jnp.float32(total)
    if reduction == "sum":
        return loss_sum
    # TODO(synk): reduction='none' would need an elementwise-output kernel;
    # only 'mean'/'sum' are implemented here (module default is 'mean').
    raise NotImplementedError(reduction)


def _focal_loss_ref(logits, label, alpha=0.25, gamma=2.0, reduction="mean"):
    x = logits.astype(jnp.float32)
    y = label.astype(jnp.float32)
    probs = jax.nn.sigmoid(x)
    coeff = -jnp.power(jnp.abs(y - probs), gamma)
    loss = y * alpha * jax.nn.log_sigmoid(x) \
        + (1.0 - y) * (1.0 - alpha) * jax.nn.log_sigmoid(-x)
    loss = loss * coeff
    return jnp.mean(loss) if reduction == "mean" else jnp.sum(loss)


if __name__ == "__main__":
    key = jax.random.PRNGKey(0)

    # Small NCHW shapes consistent with the module's usage.  Extra cases force
    # small tile sizes / explicit splits so the lane-remainder mask, the
    # multi-block accumulation, and the split/phantom-block paths all run.
    cases = [
        ((2, 4, 16, 16), {}),                                       # single full block
        ((2, 3, 25, 25), {}),                                       # lane remainder mask
        ((2, 16, 96, 96), dict(max_tile_rows=256)),                 # multi-block accumulation
        ((2, 8, 48, 48), dict(max_tile_rows=128, num_splits=2)),    # 2-way split + phantom + partial tail
    ]
    keys = jax.random.split(key, 2 * len(cases))
    for idx, (shape, kwargs) in enumerate(cases):
        k_logits, k_label = keys[2 * idx], keys[2 * idx + 1]
        logits = jax.random.normal(k_logits, shape, dtype=jnp.float32)
        label = jax.random.randint(k_label, shape, 0, 2).astype(jnp.float32)

        out = focal_loss_v1(logits, label, alpha=0.25, gamma=2.0,
                            reduction="mean", **kwargs)
        out = jax.block_until_ready(out)
        ref = _focal_loss_ref(logits, label, alpha=0.25, gamma=2.0,
                              reduction="mean")
        assert jnp.allclose(out, ref, rtol=1e-4, atol=1e-6), (shape, out, ref)

    # One 'sum' reduction check on the primary small case.
    logits = jax.random.normal(keys[0], (2, 4, 16, 16), dtype=jnp.float32)
    label = jax.random.randint(keys[1], (2, 4, 16, 16), 0, 2).astype(jnp.float32)
    out = jax.block_until_ready(
        focal_loss_v1(logits, label, reduction="sum"))
    ref = _focal_loss_ref(logits, label, reduction="sum")
    assert jnp.allclose(out, ref, rtol=1e-4, atol=1e-4), (out, ref)

    print("KERNEL_OK")
</pallas_src>

<mosaic_0001>
module attributes {stable_mosaic.version = 11 : i64} {
  func.func @_focal_loss_kernel(%arg0: i32, %arg1: i32, %arg2: memref<16x128xf32, #tpu.memory_space<vmem>>, %arg3: memref<16x128xbf16, #tpu.memory_space<vmem>>, %arg4: memref<1x8x128xf32, #tpu.memory_space<vmem>>, %arg5: memref<8x128xf32, #tpu.memory_space<vmem>>) attributes {dimension_semantics = [#tpu.dimension_semantics<arbitrary>, #tpu.dimension_semantics<arbitrary>], iteration_bounds = array<i64: 1, 1>, scalar_prefetch = 0 : i64, scratch_operands = 1 : i64, tpu.core_type = #tpu.core_type<tc>, window_params = [{transform_indices = @transform_0, window_bounds = array<i64: 16, 128>}, {transform_indices = @transform_1, window_bounds = array<i64: 16, 128>}, {transform_indices = @transform_2, window_bounds = array<i64: 1, 8, 128>}]} {
    %c0_i32 = arith.constant 0 : i32
    %0 = arith.cmpi eq, %arg1, %c0_i32 : i32
    %1 = arith.extui %0 : i1 to i32
    %c0_i32_0 = arith.constant 0 : i32
    %2 = arith.cmpi ne, %1, %c0_i32_0 : i32
    scf.if %2 {
      %cst_17 = arith.constant 0.000000e+00 : f32
      %44 = vector.broadcast %cst_17 : f32 to vector<8x128xf32>
      %c0_18 = arith.constant 0 : index
      %c0_19 = arith.constant 0 : index
      %45 = vector.load %arg5[%c0_18, %c0_19] : memref<8x128xf32, #tpu.memory_space<vmem>>, vector<8x128xf32>
      tpu.vector_store %arg5[%c0_18, %c0_19], %44 {strides = array<i32>} : memref<8x128xf32, #tpu.memory_space<vmem>>, vector<8x128xf32>,
    } else {
    }
    %c0 = arith.constant 0 : index
    %c0_1 = arith.constant 0 : index
    %3 = vector.load %arg2[%c0, %c0_1] : memref<16x128xf32, #tpu.memory_space<vmem>>, vector<16x128xf32>
    %c0_2 = arith.constant 0 : index
    %c0_3 = arith.constant 0 : index
    %4 = vector.load %arg3[%c0_2, %c0_3] : memref<16x128xbf16, #tpu.memory_space<vmem>>, vector<16x128xbf16>
    %5 = arith.extf %4 : vector<16x128xbf16> to vector<16x128xf32>
    %6 = math.absf %3 : vector<16x128xf32>
    %cst = arith.constant 0.000000e+00 : f32
    %7 = vector.broadcast %cst : f32 to vector<16x128xf32>
    %8 = arith.subf %7, %6 : vector<16x128xf32>
    %9 = math.exp %8 : vector<16x128xf32>
    %10 = math.log1p %9 : vector<16x128xf32>
    %cst_4 = arith.constant 1.000000e+00 : f32
    %11 = vector.broadcast %cst_4 : f32 to vector<16x128xf32>
    %12 = arith.addf %11, %9 : vector<16x128xf32>
    %13 = tpu.reciprocal %12 {approx = true} : vector<16x128xf32> -> vector<16x128xf32>
    %14 = arith.mulf %12, %13 : vector<16x128xf32>
    %cst_5 = arith.constant 2.000000e+00 : f32
    %15 = vector.broadcast %cst_5 : f32 to vector<16x128xf32>
    %16 = arith.subf %15, %14 : vector<16x128xf32>
    %17 = arith.mulf %13, %16 : vector<16x128xf32>
    %cst_6 = arith.constant 0.000000e+00 : f32
    %18 = vector.broadcast %cst_6 : f32 to vector<16x128xf32>
    %19 = arith.cmpf oge, %3, %18 : vector<16x128xf32>
    %20 = arith.mulf %9, %17 : vector<16x128xf32>
    %21 = arith.select %19, %17, %20 : vector<16x128xi1>, vector<16x128xf32>
    %cst_7 = arith.constant 0.000000e+00 : f32
    %22 = vector.broadcast %cst_7 : f32 to vector<16x128xf32>
    %23 = arith.minimumf %3, %22 : vector<16x128xf32>
    %24 = arith.subf %23, %10 : vector<16x128xf32>
    %25 = arith.subf %24, %3 : vector<16x128xf32>
    %26 = arith.subf %5, %21 : vector<16x128xf32>
    %27 = arith.mulf %26, %26 : vector<16x128xf32>
    %cst_8 = arith.constant 2.500000e-01 : f32
    %28 = vector.broadcast %cst_8 : f32 to vector<16x128xf32>
    %29 = arith.mulf %28, %24 : vector<16x128xf32>
    %cst_9 = arith.constant 7.500000e-01 : f32
    %30 = vector.broadcast %cst_9 : f32 to vector<16x128xf32>
    %31 = arith.mulf %30, %25 : vector<16x128xf32>
    %32 = arith.subf %29, %31 : vector<16x128xf32>
    %33 = arith.mulf %5, %32 : vector<16x128xf32>
    %34 = arith.addf %31, %33 : vector<16x128xf32>
    %35 = arith.mulf %34, %27 : vector<16x128xf32>
    %c0_10 = arith.constant 0 : index
    %c0_11 = arith.constant 0 : index
    %36 = vector.load %arg5[%c0_10, %c0_11] : memref<8x128xf32, #tpu.memory_space<vmem>>, vector<8x128xf32>
    %37 = vector.shape_cast %35 : vector<16x128xf32> to vector<2x8x128xf32>
    %cst_12 = arith.constant dense<0.000000e+00> : vector<8x128xf32>
    %38 = vector.multi_reduction <add>, %37, %cst_12 [0] : vector<2x8x128xf32> to vector<8x128xf32>
    %39 = arith.addf %36, %38 : vector<8x128xf32>
    %c0_13 = arith.constant 0 : index
    %c0_14 = arith.constant 0 : index
    %40 = vector.load %arg5[%c0_13, %c0_14] : memref<8x128xf32, #tpu.memory_space<vmem>>, vector<8x128xf32>
    tpu.vector_store %arg5[%c0_13, %c0_14], %39 {strides = array<i32>} : memref<8x128xf32, #tpu.memory_space<vmem>>, vector<8x128xf32>,
    %c0_i32_15 = arith.constant 0 : i32
    %41 = arith.cmpi eq, %arg1, %c0_i32_15 : i32
    %42 = arith.extui %41 : i1 to i32
    %c0_i32_16 = arith.constant 0 : i32
    %43 = arith.cmpi ne, %42, %c0_i32_16 : i32
    scf.if %43 {
      %c0_17 = arith.constant 0 : index
      %c0_18 = arith.constant 0 : index
      %44 = vector.load %arg5[%c0_17, %c0_18] : memref<8x128xf32, #tpu.memory_space<vmem>>, vector<8x128xf32>
      %c0_19 = arith.constant 0 : index
      %c0_20 = arith.constant 0 : index
      %c0_21 = arith.constant 0 : index
      %45 = vector.load %arg4[%c0_19, %c0_20, %c0_21] : memref<1x8x128xf32, #tpu.memory_space<vmem>>, vector<1x8x128xf32>
      %46 = vector.shape_cast %45 : vector<1x8x128xf32> to vector<8x128xf32>
      %47 = vector.shape_cast %44 : vector<8x128xf32> to vector<1x8x128xf32>
      tpu.vector_store %arg4[%c0_19, %c0_20, %c0_21], %47 {strides = array<i32>} : memref<1x8x128xf32, #tpu.memory_space<vmem>>, vector<1x8x128xf32>,
    } else {
    }
    return
  }
  func.func @transform_0(%arg0: i32, %arg1: i32) -> (i32, i32) {
    %c1_i32 = arith.constant 1 : i32
    %0 = arith.muli %arg0, %c1_i32 : i32
    %1 = arith.addi %0, %arg1 : i32
    %c0_i32 = arith.constant 0 : i32
    %2 = arith.minsi %1, %c0_i32 : i32
    %c0_i32_0 = arith.constant 0 : i32
    %c0_i32_1 = arith.constant 0 : i32
    return %2, %c0_i32_0 : i32, i32
  }
  func.func @transform_1(%arg0: i32, %arg1: i32) -> (i32, i32) {
    %c1_i32 = arith.constant 1 : i32
    %0 = arith.muli %arg0, %c1_i32 : i32
    %1 = arith.addi %0, %arg1 : i32
    %c0_i32 = arith.constant 0 : i32
    %2 = arith.minsi %1, %c0_i32 : i32
    %c0_i32_0 = arith.constant 0 : i32
    %c0_i32_1 = arith.constant 0 : i32
    return %2, %c0_i32_0 : i32, i32
  }
  func.func @transform_2(%arg0: i32, %arg1: i32) -> (i32, i32, i32) {
    %c0_i32 = arith.constant 0 : i32
    %c0_i32_0 = arith.constant 0 : i32
    %c0_i32_1 = arith.constant 0 : i32
    return %arg0, %c0_i32, %c0_i32_0 : i32, i32, i32
  }
}

</mosaic_0001>

<llo_original>
// kernel: tpu_custom_call.1
$region0: #{tpu_custom_call.1}
  #allocation0 [shape = 'u32[]', space=smem, size = 0x4, offset = 0x4, fixed_abs, tag = 'smem constant byte address 0x4 - core index']
  #allocation1 [shape = 'u32[144,128]{1,0:T(1,128)}', space=vmem, size = 0x12000, scoped, tag = 'internal scratch']
  #allocation2 [shape = 'f32[8,128]{1,0:T(8,128)}', space=vmem, size = 0x1000, scoped, tag = 'scratch operand']
  %s0 = inlined_call_operand.hbm [shape: f32[16,128], index: 0, kind: input, shape index: {}]
  %s1 = inlined_call_operand.hbm [shape: bf16[16,128], index: 1, kind: input, shape index: {}]
  %s2 = inlined_call_operand.hbm [shape: f32[1,8,128], index: 2, kind: output, shape index: {}]
  %s3 = sld [smem:[#allocation0]]
  $region34: #{tpu_custom_call.1} parent=0
    _
  %s5 = ssub.s32 1, %s3
  %s6 = scalar_select 0, %s5, %s3
  $region1: #{tpu_custom_call.1} parent=0
    #allocation3 [shape = 'u8[8192]{0}', space=vmem, size = 0x2000, scoped, tag = 'input window, operand 0, single buffered']
    #allocation4 [shape = 's32[1]{0}', space=sflag, size = 0x4, scoped, tag = 'scoped memory for tpu_custom_call.1']
    #allocation5 [shape = 's32[1]{0}', space=sflag, size = 0x4, scoped, tag = 'scoped memory for tpu_custom_call.1']
    #allocation6 [shape = 'u8[4096]{0}', space=vmem, size = 0x1000, scoped, tag = 'input window, operand 1, single buffered']
    #allocation7 [shape = 's32[1]{0}', space=sflag, size = 0x4, scoped, tag = 'scoped memory for tpu_custom_call.1']
    #allocation8 [shape = 'u8[4096]{0}', space=vmem, size = 0x1000, scoped, tag = 'output window, operand 0, single buffered']
    %7 = vsyncpa [#allocation4], 0
    %8 = vsyncpa [#allocation7], 0
    %9 = vsyncpa [#allocation5], 0
    // Predicated region
    $region2: #{tpu_custom_call.1} parent=1 // pred_check
      _
    $region3: #{tpu_custom_call.1} parent=1 // pred_check_branch
      %11 = sbr.rel (0) target = $region5
    $region4: #{tpu_custom_call.1} parent=1 // pred_region
      %s12 = sadd.s32 0, 0
      %p13 = scmp.lt.s32.totalorder %s12, 0
      %s14 = scalar_select %p13, %s12, 0
      %s15 = smul.u32 2, %s14
      %s17 = ssub.s32 256, 256
      %18 = vsyncadd [#allocation4], %s17
      %s19 = smul.addr %s15, 128
      %s20 = scalar_lea.hbm %s0, %s19
      %s21 = sshll.u32 [#allocation3], 4
      %s22 = int_to_ptr.vmem [resolvable:$true] %s21
      %27 = dma.hbm_to_vmem [thread:$0]  %s20, 256, %s22, [#allocation4], 128, 128, 8
    $region5: #{tpu_custom_call.1} parent=1 // pred_fallthru
      _
    // Predicated region
    $region6: #{tpu_custom_call.1} parent=1 // pred_check
      _
    $region7: #{tpu_custom_call.1} parent=1 // pred_check_branch
      %29 = sbr.rel (0) target = $region9
    $region8: #{tpu_custom_call.1} parent=1 // pred_region
      %s30 = sadd.s32 0, 0
      %p31 = scmp.lt.s32.totalorder %s30, 0
      %s32 = scalar_select %p31, %s30, 0
      %s33 = smul.u32 2, %s32
      %s35 = ssub.s32 128, 128
      %36 = vsyncadd [#allocation7], %s35
      %s37 = smul.addr %s33, 64
      %s38 = scalar_lea.hbm %s1, %s37
      %s39 = sshll.u32 [#allocation6], 4
      %s40 = int_to_ptr.vmem [resolvable:$true] %s39
      %45 = dma.hbm_to_vmem [thread:$0]  %s38, 128, %s40, [#allocation7], 64, 64, 4
    $region9: #{tpu_custom_call.1} parent=1 // pred_fallthru
      _
    // Predicated region
    $region10: #{tpu_custom_call.1} parent=1 // pred_check
      _
    $region11: #{tpu_custom_call.1} parent=1 // pred_check_branch
      %47 = sbr.rel (0) target = $region13
    $region12: #{tpu_custom_call.1} parent=1 // pred_region
      %48 = dma.done [#allocation4], 256
    $region13: #{tpu_custom_call.1} parent=1 // pred_fallthru
      _
    // Predicated region
    $region14: #{tpu_custom_call.1} parent=1 // pred_check
      _
    $region15: #{tpu_custom_call.1} parent=1 // pred_check_branch
      %50 = sbr.rel (0) target = $region17
    $region16: #{tpu_custom_call.1} parent=1 // pred_region
      %51 = dma.done [#allocation7], 128
    $region17: #{tpu_custom_call.1} parent=1 // pred_fallthru
      _
    %s52 = sadd.s32 0, 0
    %p53 = scmp.lt.s32.totalorder %s52, 0
    %s54 = scalar_select %p53, %s52, 0
    %s55 = smul.u32 2, %s54
    %s56 = sadd.s32 0, 0
    %p57 = scmp.lt.s32.totalorder %s56, 0
    %s58 = scalar_select %p57, %s56, 0
    %s59 = smul.u32 2, %s58
    %p60 = scmp.eq.s32.totalorder 0, 0
    // Predicated region
    $region18: #{tpu_custom_call.1} parent=1 // pred_check
      %p61 = pneg %p60
    $region19: #{tpu_custom_call.1} parent=1 // pred_check_branch
      %63 = sbr.rel (%p61) target = $region21
    $region20: #{tpu_custom_call.1} parent=1 // pred_region
      %64 = vst [vmem:[#allocation2] sm:$0xff] 0.0
    $region21: #{tpu_custom_call.1} parent=1 // pred_fallthru
      _
    %v65 = vld [vmem:[#allocation3] sm:$0xff]
    %v66 = vld [vmem:[#allocation3 + $0x8] sm:$0xff]
    %v67 = vld [vmem:[#allocation6] sm:$0xf]
    %v68 = vld [vmem:[#allocation6 + $0x4] sm:$0xf]
    %v69 = vunpack.c.l.bf16 %v67
    %v70 = vunpack.c.l.bf16 %v68
    %v71 = vand.u32 2147483647, %v65
    %v72 = vand.u32 2147483647, %v66
    %v73 = vsub.f32 0.0, %v71
    %v74 = vsub.f32 0.0, %v72
    %v75 = vmul.f32 %v73, 1.442695
    %v76 = vpow.pop %v75
    %v77 = vmul.f32 %v74, 1.442695
    %v78 = vpow.pop %v77
    %v79 = vadd.f32 %v76, 1.0
    %v80 = vlog2.pop %v79
    %v81 = vmul.f32 %v80, 0.6931472
    %v82 = vmul.f32 -0.5, %v76
    %v83 = vadd.f32 %v82, 1.0
    %v84 = vmul.f32 %v83, %v76
    %v85 = vand.u32 2147483647, %v76
    %vm86 = vcmp.lt.f32.partialorder %v85, 0.0004427343
    %v87 = vsel %vm86, %v84, %v81
    %v88 = vadd.f32 %v78, 1.0
    %v89 = vlog2.pop %v88
    %v90 = vmul.f32 %v89, 0.6931472
    %v91 = vmul.f32 -0.5, %v78
    %v92 = vadd.f32 %v91, 1.0
    %v93 = vmul.f32 %v92, %v78
    %v94 = vand.u32 2147483647, %v78
    %vm95 = vcmp.lt.f32.partialorder %v94, 0.0004427343
    %v96 = vsel %vm95, %v93, %v90
    %v97 = vadd.f32 %v76, 1.0
    %v98 = vadd.f32 %v78, 1.0
    %v99 = vrcp.pop %v97
    %v100 = vrcp.pop %v98
    %v101 = vmul.f32 %v97, %v99
    %v102 = vmul.f32 %v98, %v100
    %v103 = vsub.f32 2.0, %v101
    %v104 = vsub.f32 2.0, %v102
    %v105 = vmul.f32 %v99, %v103
    %v106 = vmul.f32 %v100, %v104
    %vm107 = vcmp.ge.f32.partialorder %v65, 0.0
    %vm108 = vcmp.ge.f32.partialorder %v66, 0.0
    %v109 = vmul.f32 %v76, %v105
    %v110 = vmul.f32 %v78, %v106
    %v111 = vsel %vm107, %v105, %v109
    %v112 = vsel %vm108, %v106, %v110
    %v113 = vmin.f32 %v65, 0.0
    %v114 = vmin.f32 %v66, 0.0
    %v115 = vsub.f32 %v113, %v87
    %v116 = vsub.f32 %v114, %v96
    %v117 = vsub.f32 %v115, %v65
    %v118 = vsub.f32 %v116, %v66
    %v119 = vsub.f32 %v69, %v111
    %v120 = vsub.f32 %v70, %v112
    %v121 = vmul.f32 %v119, %v119
    %v122 = vmul.f32 %v120, %v120
    %v123 = vmul.f32 %v115, 0.25
    %v124 = vmul.f32 %v116, 0.25
    %v125 = vmul.f32 %v117, 0.75
    %v126 = vmul.f32 %v118, 0.75
    %v127 = vsub.f32 %v123, %v125
    %v128 = vsub.f32 %v124, %v126
    %v129 = vmul.f32 %v69, %v127
    %v130 = vmul.f32 %v70, %v128
    %v131 = vadd.f32 %v125, %v129
    %v132 = vadd.f32 %v126, %v130
    %v133 = vmul.f32 %v131, %v121
    %v134 = vmul.f32 %v132, %v122
    %v135 = vld [vmem:[#allocation2] sm:$0xff]
    %v136 = vadd.f32 %v133, %v134
    %v137 = vadd.f32 %v135, %v136
    %138 = vst [vmem:[#allocation2] sm:$0xff] %v137
    // Predicated region
    $region22: #{tpu_custom_call.1} parent=1 // pred_check
      %p139 = pneg %p60
    $region23: #{tpu_custom_call.1} parent=1 // pred_check_branch
      %141 = sbr.rel (%p139) target = $region25
    $region24: #{tpu_custom_call.1} parent=1 // pred_region
      %v142 = vld [vmem:[#allocation2] sm:$0xff]
      %143 = vst [vmem:[#allocation8] sm:$0xff] %v142
    $region25: #{tpu_custom_call.1} parent=1 // pred_fallthru
      _
    // Predicated region
    $region26: #{tpu_custom_call.1} parent=1 // pred_check
      _
    $region27: #{tpu_custom_call.1} parent=1 // pred_check_branch
      %145 = sbr.rel (0) target = $region29
    $region28: #{tpu_custom_call.1} parent=1 // pred_region
      %s147 = ssub.s32 128, 128
      %148 = vsyncadd [#allocation5], %s147
      %s150 = sshll.u32 [#allocation8], 4
      %s151 = int_to_ptr.vmem [resolvable:$true] %s150
      %153 = dma.vmem_to_hbm [thread:$0]  %s151, 128, %s2, [#allocation5]
    $region29: #{tpu_custom_call.1} parent=1 // pred_fallthru
      _
    // Predicated region
    $region30: #{tpu_custom_call.1} parent=1 // pred_check
      _
    $region31: #{tpu_custom_call.1} parent=1 // pred_check_branch
      %155 = sbr.rel (0) target = $region33
    $region32: #{tpu_custom_call.1} parent=1 // pred_region
      %156 = dma.done [#allocation5], 128
    $region33: #{tpu_custom_call.1} parent=1 // pred_fallthru
      _
    %157 = vsyncpa [#allocation4], 1
    %158 = vsyncpa [#allocation7], 1
    %159 = vsyncpa [#allocation5], 1

</llo_original>
